<compile_context>
chip_gen: v5e
topology: v5e:2x2
jax: 0.10.0
libtpu: 0.0.40
codegen_flags: <defaults>
</compile_context>

<pallas_src>
import jax
import jax.numpy as jnp
from jax.experimental import pallas as pl
from jax.experimental.pallas import tpu as pltpu


def _semantic_encoder_kernel(x_ref, w1_ref, b1_ref, w2_ref, b2_ref,
                             w3_ref, b3_ref, o_ref):
    # In-kernel f32 -> bf16 cast of the activation tile (avoids a wrapper-side
    # cast and an extra HBM round trip on x).
    x = x_ref[...].astype(w1_ref.dtype)

    # Layer 1: Linear + ReLU   (Dropout == identity in eval mode)
    h1 = jnp.dot(x, w1_ref[...], preferred_element_type=jnp.float32)
    h1 = jnp.maximum(h1 + b1_ref[...], 0.0)

    # Layer 2: Linear + ReLU   (Dropout == identity in eval mode)
    h2 = jnp.dot(h1.astype(w2_ref.dtype), w2_ref[...],
                 preferred_element_type=jnp.float32)
    h2 = jnp.maximum(h2 + b2_ref[...], 0.0)

    # Layer 3: Linear + Tanh   (lane-padded N; pad columns are tanh(0) = 0)
    h3 = jnp.dot(h2.astype(w3_ref.dtype), w3_ref[...],
                 preferred_element_type=jnp.float32)
    o_ref[...] = jnp.tanh(h3 + b3_ref[...]).astype(o_ref.dtype)   # bf16 store


def prepare_params(params, *, compute_dtype=jnp.bfloat16):
    """One-time preprocessing (hoisted out of the per-call forward):
    lane-pads W3/b3 to a multiple of 128 output lanes, casts weights to bf16
    and biases to f32.  Weights are stored (in_features, out_features)."""
    w1, w2, w3 = params["w1"], params["w2"], params["w3"]
    b1, b2, b3 = params["b1"], params["b2"], params["b3"]
    out_dim = w3.shape[1]
    out_pad = ((out_dim + 127) // 128) * 128
    if out_pad != out_dim:
        w3 = jnp.pad(w3, ((0, 0), (0, out_pad - out_dim)))
        b3 = jnp.pad(b3, ((0, 0), (0, out_pad - out_dim)))
    prepared = {
        "w1": w1.astype(compute_dtype),
        "w2": w2.astype(compute_dtype),
        "w3": w3.astype(compute_dtype),
        "b1": b1.astype(jnp.float32),
        "b2": b2.astype(jnp.float32),
        "b3": b3.astype(jnp.float32),
        "out_dim": int(out_dim),
    }
    return jax.block_until_ready(jax.tree_util.tree_map(
        lambda v: v if not isinstance(v, jnp.ndarray) else v, prepared))


def _auto_tile_m(M):
    if M <= 128:
        return max(8, ((M + 7) // 8) * 8)   # single grid step (whole batch)
    if M >= 1024:
        return 512                          # fills 256-row MXU passes, amortizes overhead
    return 128                              # grid >= 2 keeps both v7x TCs busy


def semantic_encoder_forward(x, prepared, *, tile_m=None):
    """x: (M, input_dim) f32.  `prepared`: output of prepare_params()."""
    w1, b1 = prepared["w1"], prepared["b1"]
    w2, b2 = prepared["w2"], prepared["b2"]
    w3, b3 = prepared["w3"], prepared["b3"]
    out_dim = prepared["out_dim"]

    M, in_dim = x.shape
    hid, hid2, out_pad = w1.shape[1], w2.shape[1], w3.shape[1]
    out_dtype = x.dtype

    if tile_m is None:
        tile_m = _auto_tile_m(M)

    # Pad batch to a multiple of tile_m; padded rows produce garbage (relu(b1)
    # propagates) and MUST be sliced off below -- do not remove the [:M].
    m_pad = pl.cdiv(M, tile_m) * tile_m
    x_p = x if m_pad == M else jnp.pad(x, ((0, m_pad - M), (0, 0)))

    grid = (m_pad // tile_m,)
    full = lambda shape: pl.BlockSpec(shape, lambda i: (0, 0))  # resident operand

    flops = 2 * m_pad * (in_dim * hid + hid * hid2 + hid2 * out_pad)
    bytes_accessed = (
        x_p.size * x_p.dtype.itemsize
        + sum(w.size * w.dtype.itemsize for w in (w1, w2, w3))
        + sum(b.size * b.dtype.itemsize for b in (b1, b2, b3))
        + m_pad * out_pad * 2)  # bf16 output writeback

    out_padded = pl.pallas_call(
        _semantic_encoder_kernel,
        out_shape=jax.ShapeDtypeStruct((m_pad, out_pad), jnp.bfloat16),
        grid_spec=pltpu.PrefetchScalarGridSpec(
            num_scalar_prefetch=0,
            grid=grid,
            in_specs=[
                pl.BlockSpec((tile_m, in_dim), lambda i: (i, 0)),  # x row tile (f32)
                full((in_dim, hid)),        # W1 (bf16, resident)
                full((1, hid)),             # b1 (f32)
                full((hid, hid2)),          # W2
                full((1, hid2)),            # b2
                full((hid2, out_pad)),      # W3 (lane-padded)
                full((1, out_pad)),         # b3 (lane-padded)
            ],
            out_specs=pl.BlockSpec((tile_m, out_pad), lambda i: (i, 0)),
        ),
        compiler_params=pltpu.CompilerParams(
            dimension_semantics=("parallel",),   # batch tiles shard across TCs
        ),
        cost_estimate=pl.CostEstimate(
            flops=flops,
            transcendentals=m_pad * out_pad,
            bytes_accessed=bytes_accessed,
        ),
    )(x_p, w1, b1, w2, b2, w3, b3)

    return out_padded[:M, :out_dim].astype(out_dtype)


def init_params(key, input_dim, hidden_dim, output_dim, dtype=jnp.float32):
    """Mimics nn.Linear's uniform(-1/sqrt(fan_in), +1/sqrt(fan_in)) init.
    Weights are stored transposed: (in_features, out_features)."""
    dims = [(input_dim, hidden_dim),
            (hidden_dim, hidden_dim // 2),
            (hidden_dim // 2, output_dim)]
    params = {}
    for n, (fan_in, fan_out) in enumerate(dims, start=1):
        key, kw, kb = jax.random.split(key, 3)
        bound = 1.0 / (fan_in ** 0.5)
        params[f"w{n}"] = jax.random.uniform(
            kw, (fan_in, fan_out), dtype, minval=-bound, maxval=bound)
        params[f"b{n}"] = jax.random.uniform(
            kb, (1, fan_out), dtype, minval=-bound, maxval=bound)
    return params


def reference_forward(x, params):
    h = jnp.maximum(x @ params["w1"] + params["b1"], 0.0)
    h = jnp.maximum(h @ params["w2"] + params["b2"], 0.0)
    return jnp.tanh(h @ params["w3"] + params["b3"])


if __name__ == "__main__":
    input_dim, hidden_dim, output_dim = 32, 64, 16

    key = jax.random.PRNGKey(0)
    key, kx = jax.random.split(key)
    params = init_params(key, input_dim, hidden_dim, output_dim)
    prepared = prepare_params(params)   # one-time pad + cast, hoisted out of forward

    # Case 1: batch=256 -> tile_m=128, grid=(2,): both v7x TensorCores get a tile.
    batch = 256
    x = jax.random.normal(kx, (batch, input_dim), jnp.float32)
    out = jax.block_until_ready(semantic_encoder_forward(x, prepared))
    ref = reference_forward(x, params)  # pure f32 reference
    assert out.shape == (batch, output_dim)
    max_err = float(jnp.max(jnp.abs(out.astype(jnp.float32) - ref)))
    # bf16 weights/activations/output with f32 accumulation -> loosened tolerance.
    assert max_err < 5e-2, f"max abs err {max_err}"

    # Case 2: ragged small batch exercises the row-padding path (grid=(1,)).
    x2 = x[:37]
    out2 = jax.block_until_ready(semantic_encoder_forward(x2, prepared))
    ref2 = reference_forward(x2, params)
    assert out2.shape == (37, output_dim)
    max_err2 = float(jnp.max(jnp.abs(out2.astype(jnp.float32) - ref2)))
    assert max_err2 < 5e-2, f"max abs err {max_err2}"

    print("KERNEL_OK")
</pallas_src>

<mosaic_0001>
module attributes {stable_mosaic.version = 11 : i64} {
  func.func @_semantic_encoder_kernel(%arg0: i32, %arg1: memref<128x32xf32, #tpu.memory_space<vmem>>, %arg2: memref<32x64xbf16, #tpu.memory_space<vmem>>, %arg3: memref<1x64xf32, #tpu.memory_space<vmem>>, %arg4: memref<64x32xbf16, #tpu.memory_space<vmem>>, %arg5: memref<1x32xf32, #tpu.memory_space<vmem>>, %arg6: memref<32x128xbf16, #tpu.memory_space<vmem>>, %arg7: memref<1x128xf32, #tpu.memory_space<vmem>>, %arg8: memref<128x128xbf16, #tpu.memory_space<vmem>>) attributes {dimension_semantics = [#tpu.dimension_semantics<parallel>], iteration_bounds = array<i64: 2>, scalar_prefetch = 0 : i64, scratch_operands = 0 : i64, tpu.core_type = #tpu.core_type<tc>, window_params = [{transform_indices = @transform_0, window_bounds = array<i64: 128, 32>}, {pipeline_mode = #tpu.pipeline_mode<synchronous>, transform_indices = @transform_1, window_bounds = array<i64: 32, 64>}, {pipeline_mode = #tpu.pipeline_mode<synchronous>, transform_indices = @transform_2, window_bounds = array<i64: 1, 64>}, {pipeline_mode = #tpu.pipeline_mode<synchronous>, transform_indices = @transform_3, window_bounds = array<i64: 64, 32>}, {pipeline_mode = #tpu.pipeline_mode<synchronous>, transform_indices = @transform_4, window_bounds = array<i64: 1, 32>}, {pipeline_mode = #tpu.pipeline_mode<synchronous>, transform_indices = @transform_5, window_bounds = array<i64: 32, 128>}, {pipeline_mode = #tpu.pipeline_mode<synchronous>, transform_indices = @transform_6, window_bounds = array<i64: 1, 128>}, {transform_indices = @transform_7, window_bounds = array<i64: 128, 128>}]} {
    %c0 = arith.constant 0 : index
    %c0_0 = arith.constant 0 : index
    %0 = vector.load %arg1[%c0, %c0_0] : memref<128x32xf32, #tpu.memory_space<vmem>>, vector<128x32xf32>
    %1 = arith.truncf %0 : vector<128x32xf32> to vector<128x32xbf16>
    %c0_1 = arith.constant 0 : index
    %c0_2 = arith.constant 0 : index
    %2 = vector.load %arg2[%c0_1, %c0_2] : memref<32x64xbf16, #tpu.memory_space<vmem>>, vector<32x64xbf16>
    %cst = arith.constant dense<0.000000e+00> : vector<128x64xf32>
    %3 = tpu.matmul %1, %2, %cst {dimension_numbers = #tpu.dot_dimension_numbers<[1], [0], [0], [1], [0, 0, 1, 1], [], []>} : vector<128x32xbf16>, vector<32x64xbf16>, vector<128x64xf32> -> vector<128x64xf32>
    %c0_3 = arith.constant 0 : index
    %c0_4 = arith.constant 0 : index
    %4 = vector.load %arg3[%c0_3, %c0_4] : memref<1x64xf32, #tpu.memory_space<vmem>>, vector<1x64xf32>
    %5 = vector.broadcast %4 : vector<1x64xf32> to vector<128x64xf32>
    %6 = arith.addf %3, %5 : vector<128x64xf32>
    %cst_5 = arith.constant 0.000000e+00 : f32
    %7 = vector.broadcast %cst_5 : f32 to vector<128x64xf32>
    %8 = arith.maximumf %6, %7 : vector<128x64xf32>
    %9 = arith.truncf %8 : vector<128x64xf32> to vector<128x64xbf16>
    %c0_6 = arith.constant 0 : index
    %c0_7 = arith.constant 0 : index
    %10 = vector.load %arg4[%c0_6, %c0_7] : memref<64x32xbf16, #tpu.memory_space<vmem>>, vector<64x32xbf16>
    %cst_8 = arith.constant dense<0.000000e+00> : vector<128x32xf32>
    %11 = tpu.matmul %9, %10, %cst_8 {dimension_numbers = #tpu.dot_dimension_numbers<[1], [0], [0], [1], [0, 0, 1, 1], [], []>} : vector<128x64xbf16>, vector<64x32xbf16>, vector<128x32xf32> -> vector<128x32xf32>
    %c0_9 = arith.constant 0 : index
    %c0_10 = arith.constant 0 : index
    %12 = vector.load %arg5[%c0_9, %c0_10] : memref<1x32xf32, #tpu.memory_space<vmem>>, vector<1x32xf32>
    %13 = vector.broadcast %12 : vector<1x32xf32> to vector<128x32xf32>
    %14 = arith.addf %11, %13 : vector<128x32xf32>
    %cst_11 = arith.constant 0.000000e+00 : f32
    %15 = vector.broadcast %cst_11 : f32 to vector<128x32xf32>
    %16 = arith.maximumf %14, %15 : vector<128x32xf32>
    %17 = arith.truncf %16 : vector<128x32xf32> to vector<128x32xbf16>
    %c0_12 = arith.constant 0 : index
    %c0_13 = arith.constant 0 : index
    %18 = vector.load %arg6[%c0_12, %c0_13] : memref<32x128xbf16, #tpu.memory_space<vmem>>, vector<32x128xbf16>
    %cst_14 = arith.constant dense<0.000000e+00> : vector<128x128xf32>
    %19 = tpu.matmul %17, %18, %cst_14 {dimension_numbers = #tpu.dot_dimension_numbers<[1], [0], [0], [1], [0, 0, 1, 1], [], []>} : vector<128x32xbf16>, vector<32x128xbf16>, vector<128x128xf32> -> vector<128x128xf32>
    %c0_15 = arith.constant 0 : index
    %c0_16 = arith.constant 0 : index
    %20 = vector.load %arg7[%c0_15, %c0_16] : memref<1x128xf32, #tpu.memory_space<vmem>>, vector<1x128xf32>
    %21 = vector.broadcast %20 : vector<1x128xf32> to vector<128x128xf32>
    %22 = arith.addf %19, %21 : vector<128x128xf32>
    %23 = math.tanh %22 : vector<128x128xf32>
    %24 = arith.truncf %23 : vector<128x128xf32> to vector<128x128xbf16>
    %c0_17 = arith.constant 0 : index
    %c0_18 = arith.constant 0 : index
    %25 = vector.load %arg8[%c0_17, %c0_18] : memref<128x128xbf16, #tpu.memory_space<vmem>>, vector<128x128xbf16>
    tpu.vector_store %arg8[%c0_17, %c0_18], %24 {strides = array<i32>} : memref<128x128xbf16, #tpu.memory_space<vmem>>, vector<128x128xbf16>,
    return
  }
  func.func @transform_0(%arg0: i32) -> (i32, i32) {
    %c0_i32 = arith.constant 0 : i32
    %c0_i32_0 = arith.constant 0 : i32
    return %arg0, %c0_i32 : i32, i32
  }
  func.func @transform_1(%arg0: i32) -> (i32, i32) {
    %c0_i32 = arith.constant 0 : i32
    %c0_i32_0 = arith.constant 0 : i32
    %c0_i32_1 = arith.constant 0 : i32
    return %c0_i32, %c0_i32_0 : i32, i32
  }
  func.func @transform_2(%arg0: i32) -> (i32, i32) {
    %c0_i32 = arith.constant 0 : i32
    %c0_i32_0 = arith.constant 0 : i32
    %c0_i32_1 = arith.constant 0 : i32
    return %c0_i32, %c0_i32_0 : i32, i32
  }
  func.func @transform_3(%arg0: i32) -> (i32, i32) {
    %c0_i32 = arith.constant 0 : i32
    %c0_i32_0 = arith.constant 0 : i32
    %c0_i32_1 = arith.constant 0 : i32
    return %c0_i32, %c0_i32_0 : i32, i32
  }
  func.func @transform_4(%arg0: i32) -> (i32, i32) {
    %c0_i32 = arith.constant 0 : i32
    %c0_i32_0 = arith.constant 0 : i32
    %c0_i32_1 = arith.constant 0 : i32
    return %c0_i32, %c0_i32_0 : i32, i32
  }
  func.func @transform_5(%arg0: i32) -> (i32, i32) {
    %c0_i32 = arith.constant 0 : i32
    %c0_i32_0 = arith.constant 0 : i32
    %c0_i32_1 = arith.constant 0 : i32
    return %c0_i32, %c0_i32_0 : i32, i32
  }
  func.func @transform_6(%arg0: i32) -> (i32, i32) {
    %c0_i32 = arith.constant 0 : i32
    %c0_i32_0 = arith.constant 0 : i32
    %c0_i32_1 = arith.constant 0 : i32
    return %c0_i32, %c0_i32_0 : i32, i32
  }
  func.func @transform_7(%arg0: i32) -> (i32, i32) {
    %c0_i32 = arith.constant 0 : i32
    %c0_i32_0 = arith.constant 0 : i32
    return %arg0, %c0_i32 : i32, i32
  }
}

</mosaic_0001>

<llo_original>
// kernel: tpu_custom_call.1
$region0: #{tpu_custom_call.1}
  #allocation0 [shape = 'u32[]', space=smem, size = 0x4, offset = 0x4, fixed_abs, tag = 'smem constant byte address 0x4 - core index']
  #allocation1 [shape = 'u32[72,128]{1,0:T(1,128)}', space=vmem, size = 0x9000, scoped, tag = 'internal scratch']
  %s0 = inlined_call_operand.vmem [shape: f32[256,32], index: 0, kind: input, shape index: {}]
  %s1 = inlined_call_operand.vmem [shape: bf16[32,64], index: 1, kind: input, shape index: {}]
  %s2 = inlined_call_operand.vmem [shape: f32[1,64], index: 2, kind: input, shape index: {}]
  %s3 = inlined_call_operand.vmem [shape: bf16[64,32], index: 3, kind: input, shape index: {}]
  %s4 = inlined_call_operand.vmem [shape: f32[1,32], index: 4, kind: input, shape index: {}]
  %s5 = inlined_call_operand.vmem [shape: bf16[32,128], index: 5, kind: input, shape index: {}]
  %s6 = inlined_call_operand.vmem [shape: f32[1,128], index: 6, kind: input, shape index: {}]
  %s7 = inlined_call_operand.hbm [shape: bf16[256,128], index: 7, kind: output, shape index: {}]
  %s8 = sld [smem:[#allocation0]]
  $region61: #{tpu_custom_call.1} parent=0
    _
  %s10 = ssub.s32 1, %s8
  %s11 = scalar_select 0, %s10, %s8
  $region1: #{tpu_custom_call.1} parent=0
    #allocation2 [shape = 'u8[65536]{0}', space=vmem, size = 0x10000, scoped, tag = 'output window, operand 0']
    #allocation3 [shape = 's32[2]{0}', space=sflag, size = 0x8, scoped, tag = 'scoped memory for tpu_custom_call.1']
    %12 = vsyncpa [#allocation3], 0
    %s13 = scalar_lea.sflag [#allocation3], 1
    %14 = vsyncpa %s13, 0
    loop: start=0, step=1, limit=4
    $region2: #{tpu_custom_call.1} parent=1 // loop_pre_header
      _
    $region3: #{tpu_custom_call.1} parent=1 // loop_header
      %s16 = sphi 0, %s20
      %p17 = scmp.ge.s32.totalorder %s16, 4
      %s26 = sphi 0, %s28
      %s29 = sphi 0, %s26
      %s30 = sphi 0, %s29
      %s46 = sphi 0, %s30
      %s50 = sphi 0, %s50
      %s52 = sphi 0, %s50
      %s53 = sphi 0, %s52
      %s67 = sphi 0, %s53
      %s71 = sphi 0, %s71
      %s73 = sphi 0, %s71
      %s74 = sphi 0, %s73
      %s88 = sphi 0, %s74
      %s92 = sphi 0, %s92
      %s94 = sphi 0, %s92
      %s95 = sphi 0, %s94
      %s109 = sphi 0, %s95
      %s113 = sphi 0, %s113
      %s115 = sphi 0, %s113
      %s116 = sphi 0, %s115
      %s130 = sphi 0, %s116
      %s134 = sphi 0, %s134
      %s136 = sphi 0, %s134
      %s137 = sphi 0, %s136
      %s151 = sphi 0, %s137
      %s155 = sphi 0, %s155
      %s157 = sphi 0, %s155
      %s158 = sphi 0, %s157
      %s172 = sphi 0, %s158
      %s178 = sphi 0, %s180
      %s181 = sphi 0, %s178
      %s182 = sphi 0, %s181
      %s198 = sphi 0, %s182
    $region4: #{tpu_custom_call.1} parent=1 // loop_header_branch
      %19 = sbr.rel (%p17) target = $region8
    $region5: #{tpu_custom_call.1} parent=1 // loop_body
      %s21 = ssub.s32 %s16, 1
      %s22 = ssub.s32 %s16, 2
      %s23 = sadd.s32 %s16, 1
      %s24 = ssub.s32 %s16, %s23
      %p25 = scmp.eq.s32.totalorder %s24, 0
      %s27 = sadd.s32 %s26, 1
      %s28 = scalar_select %p25, %s26, %s27
      %p31 = pneg %p25
      %p32 = scmp.eq.s32.totalorder %s16, 1
      %p33 = por %p31, %p32
      %p34 = scmp.ne.s32.totalorder %s26, %s29
      %p35 = scmp.eq.s32.totalorder %s16, 0
      %p36 = por %p34, %p35
      %p37 = scmp.ne.s32.totalorder %s26, %s29
      %p38 = scmp.eq.s32.totalorder %s21, 1
      %p39 = por %p37, %p38
      %p40 = scmp.ne.s32.totalorder %s29, %s30
      %p41 = scmp.eq.s32.totalorder %s21, 0
      %p42 = por %p40, %p41
      %p43 = scmp.ne.s32.totalorder %s29, %s30
      %p44 = scmp.eq.s32.totalorder %s22, 1
      %p45 = por %p43, %p44
      %p47 = scmp.ne.s32.totalorder %s30, %s46
      %p48 = scmp.eq.s32.totalorder %s22, 0
      %p49 = por %p47, %p48
      %s51 = sadd.s32 %s50, 1
      %p54 = scmp.eq.s32.totalorder %s16, 1
      %p55 = scmp.ne.s32.totalorder %s50, %s52
      %p56 = scmp.eq.s32.totalorder %s16, 0
      %p57 = por %p55, %p56
      %p58 = scmp.ne.s32.totalorder %s50, %s52
      %p59 = scmp.eq.s32.totalorder %s21, 1
      %p60 = por %p58, %p59
      %p61 = scmp.ne.s32.totalorder %s52, %s53
      %p62 = scmp.eq.s32.totalorder %s21, 0
      %p63 = por %p61, %p62
      %p64 = scmp.ne.s32.totalorder %s52, %s53
      %p65 = scmp.eq.s32.totalorder %s22, 1
      %p66 = por %p64, %p65
      %p68 = scmp.ne.s32.totalorder %s53, %s67
      %p69 = scmp.eq.s32.totalorder %s22, 0
      %p70 = por %p68, %p69
      %s72 = sadd.s32 %s71, 1
      %p75 = scmp.eq.s32.totalorder %s16, 1
      %p76 = scmp.ne.s32.totalorder %s71, %s73
      %p77 = scmp.eq.s32.totalorder %s16, 0
      %p78 = por %p76, %p77
      %p79 = scmp.ne.s32.totalorder %s71, %s73
      %p80 = scmp.eq.s32.totalorder %s21, 1
      %p81 = por %p79, %p80
      %p82 = scmp.ne.s32.totalorder %s73, %s74
      %p83 = scmp.eq.s32.totalorder %s21, 0
      %p84 = por %p82, %p83
      %p85 = scmp.ne.s32.totalorder %s73, %s74
      %p86 = scmp.eq.s32.totalorder %s22, 1
      %p87 = por %p85, %p86
      %p89 = scmp.ne.s32.totalorder %s74, %s88
      %p90 = scmp.eq.s32.totalorder %s22, 0
      %p91 = por %p89, %p90
      %s93 = sadd.s32 %s92, 1
      %p96 = scmp.eq.s32.totalorder %s16, 1
      %p97 = scmp.ne.s32.totalorder %s92, %s94
      %p98 = scmp.eq.s32.totalorder %s16, 0
      %p99 = por %p97, %p98
      %p100 = scmp.ne.s32.totalorder %s92, %s94
      %p101 = scmp.eq.s32.totalorder %s21, 1
      %p102 = por %p100, %p101
      %p103 = scmp.ne.s32.totalorder %s94, %s95
      %p104 = scmp.eq.s32.totalorder %s21, 0
      %p105 = por %p103, %p104
      %p106 = scmp.ne.s32.totalorder %s94, %s95
      %p107 = scmp.eq.s32.totalorder %s22, 1
      %p108 = por %p106, %p107
      %p110 = scmp.ne.s32.totalorder %s95, %s109
      %p111 = scmp.eq.s32.totalorder %s22, 0
      %p112 = por %p110, %p111
      %s114 = sadd.s32 %s113, 1
      %p117 = scmp.eq.s32.totalorder %s16, 1
      %p118 = scmp.ne.s32.totalorder %s113, %s115
      %p119 = scmp.eq.s32.totalorder %s16, 0
      %p120 = por %p118, %p119
      %p121 = scmp.ne.s32.totalorder %s113, %s115
      %p122 = scmp.eq.s32.totalorder %s21, 1
      %p123 = por %p121, %p122
      %p124 = scmp.ne.s32.totalorder %s115, %s116
      %p125 = scmp.eq.s32.totalorder %s21, 0
      %p126 = por %p124, %p125
      %p127 = scmp.ne.s32.totalorder %s115, %s116
      %p128 = scmp.eq.s32.totalorder %s22, 1
      %p129 = por %p127, %p128
      %p131 = scmp.ne.s32.totalorder %s116, %s130
      %p132 = scmp.eq.s32.totalorder %s22, 0
      %p133 = por %p131, %p132
      %s135 = sadd.s32 %s134, 1
      %p138 = scmp.eq.s32.totalorder %s16, 1
      %p139 = scmp.ne.s32.totalorder %s134, %s136
      %p140 = scmp.eq.s32.totalorder %s16, 0
      %p141 = por %p139, %p140
      %p142 = scmp.ne.s32.totalorder %s134, %s136
      %p143 = scmp.eq.s32.totalorder %s21, 1
      %p144 = por %p142, %p143
      %p145 = scmp.ne.s32.totalorder %s136, %s137
      %p146 = scmp.eq.s32.totalorder %s21, 0
      %p147 = por %p145, %p146
      %p148 = scmp.ne.s32.totalorder %s136, %s137
      %p149 = scmp.eq.s32.totalorder %s22, 1
      %p150 = por %p148, %p149
      %p152 = scmp.ne.s32.totalorder %s137, %s151
      %p153 = scmp.eq.s32.totalorder %s22, 0
      %p154 = por %p152, %p153
      %s156 = sadd.s32 %s155, 1
      %p159 = scmp.eq.s32.totalorder %s16, 1
      %p160 = scmp.ne.s32.totalorder %s155, %s157
      %p161 = scmp.eq.s32.totalorder %s16, 0
      %p162 = por %p160, %p161
      %p163 = scmp.ne.s32.totalorder %s155, %s157
      %p164 = scmp.eq.s32.totalorder %s21, 1
      %p165 = por %p163, %p164
      %p166 = scmp.ne.s32.totalorder %s157, %s158
      %p167 = scmp.eq.s32.totalorder %s21, 0
      %p168 = por %p166, %p167
      %p169 = scmp.ne.s32.totalorder %s157, %s158
      %p170 = scmp.eq.s32.totalorder %s22, 1
      %p171 = por %p169, %p170
      %p173 = scmp.ne.s32.totalorder %s158, %s172
      %p174 = scmp.eq.s32.totalorder %s22, 0
      %p175 = por %p173, %p174
      %s176 = ssub.s32 %s16, %s23
      %p177 = scmp.eq.s32.totalorder %s176, 0
      %s179 = sadd.s32 %s178, 1
      %s180 = scalar_select %p177, %s178, %s179
      %p183 = pneg %p177
      %p184 = scmp.eq.s32.totalorder %s16, 1
      %p185 = por %p183, %p184
      %p186 = scmp.ne.s32.totalorder %s178, %s181
      %p187 = scmp.eq.s32.totalorder %s16, 0
      %p188 = por %p186, %p187
      %p189 = scmp.ne.s32.totalorder %s178, %s181
      %p190 = scmp.eq.s32.totalorder %s21, 1
      %p191 = por %p189, %p190
      %p192 = scmp.ne.s32.totalorder %s181, %s182
      %p193 = scmp.eq.s32.totalorder %s21, 0
      %p194 = por %p192, %p193
      %p195 = scmp.ne.s32.totalorder %s181, %s182
      %p196 = scmp.eq.s32.totalorder %s22, 1
      %p197 = por %p195, %p196
      %p199 = scmp.ne.s32.totalorder %s182, %s198
      %p200 = scmp.eq.s32.totalorder %s22, 0
      %p201 = por %p199, %p200
      %p202 = scmp.le.s32.totalorder 1, %s16
      %p203 = scmp.lt.s32.totalorder %s16, 3
      %p204 = pnand %p202, %p203
      %p205 = pneg %p204
      // Predicated region
      $region9: #{tpu_custom_call.1} parent=5 // pred_check
        _
      $region10: #{tpu_custom_call.1} parent=5 // pred_check_branch
        %207 = sbr.rel (%p204) target = $region12
      $region11: #{tpu_custom_call.1} parent=5 // pred_region
        %s208 = ssub.s32 %s16, 1
        // Predicated region
        $region13: #{tpu_custom_call.1} parent=11 // pred_check
          %p209 = pneg %p63
        $region14: #{tpu_custom_call.1} parent=11 // pred_check_branch
          %211 = sbr.rel (%p209) target = $region16
        $region15: #{tpu_custom_call.1} parent=11 // pred_region
          _
        $region16: #{tpu_custom_call.1} parent=11 // pred_fallthru
          _
        // Predicated region
        $region17: #{tpu_custom_call.1} parent=11 // pred_check
          %p212 = pneg %p84
        $region18: #{tpu_custom_call.1} parent=11 // pred_check_branch
          %214 = sbr.rel (%p212) target = $region20
        $region19: #{tpu_custom_call.1} parent=11 // pred_region
          _
        $region20: #{tpu_custom_call.1} parent=11 // pred_fallthru
          _
        // Predicated region
        $region21: #{tpu_custom_call.1} parent=11 // pred_check
          %p215 = pneg %p105
        $region22: #{tpu_custom_call.1} parent=11 // pred_check_branch
          %217 = sbr.rel (%p215) target = $region24
        $region23: #{tpu_custom_call.1} parent=11 // pred_region
          _
        $region24: #{tpu_custom_call.1} parent=11 // pred_fallthru
          _
        // Predicated region
        $region25: #{tpu_custom_call.1} parent=11 // pred_check
          %p218 = pneg %p126
        $region26: #{tpu_custom_call.1} parent=11 // pred_check_branch
          %220 = sbr.rel (%p218) target = $region28
        $region27: #{tpu_custom_call.1} parent=11 // pred_region
          _
        $region28: #{tpu_custom_call.1} parent=11 // pred_fallthru
          _
        // Predicated region
        $region29: #{tpu_custom_call.1} parent=11 // pred_check
          %p221 = pneg %p147
        $region30: #{tpu_custom_call.1} parent=11 // pred_check_branch
          %223 = sbr.rel (%p221) target = $region32
        $region31: #{tpu_custom_call.1} parent=11 // pred_region
          _
        $region32: #{tpu_custom_call.1} parent=11 // pred_fallthru
          _
        // Predicated region
        $region33: #{tpu_custom_call.1} parent=11 // pred_check
          %p224 = pneg %p168
        $region34: #{tpu_custom_call.1} parent=11 // pred_check_branch
          %226 = sbr.rel (%p224) target = $region36
        $region35: #{tpu_custom_call.1} parent=11 // pred_region
          _
        $region36: #{tpu_custom_call.1} parent=11 // pred_fallthru
          _
      $region12: #{tpu_custom_call.1} parent=5 // pred_fallthru
        _
      %p227 = scmp.lt.s32.totalorder %s16, 2
      // Predicated region
      $region37: #{tpu_custom_call.1} parent=5 // pred_check
        %p228 = pneg %p227
      $region38: #{tpu_custom_call.1} parent=5 // pred_check_branch
        %230 = sbr.rel (%p228) target = $region40
      $region39: #{tpu_custom_call.1} parent=5 // pred_region
        // Predicated region
        $region41: #{tpu_custom_call.1} parent=39 // pred_check
          %p231 = pneg %p36
        $region42: #{tpu_custom_call.1} parent=39 // pred_check_branch
          %233 = sbr.rel (%p231) target = $region44
        $region43: #{tpu_custom_call.1} parent=39 // pred_region
          %s234 = smul.u32 16, %s16
          %p235 = scmp.lt.s32.totalorder %s234, 31
          %s236 = scalar_select %p235, %s234, 31
          %s237 = smul.addr %s236, 8
          %s238 = scalar_lea.vmem %s0, %s237
          %s239 = smul.u32 16, %s16
        $region44: #{tpu_custom_call.1} parent=39 // pred_fallthru
          _
      $region40: #{tpu_custom_call.1} parent=5 // pred_fallthru
        _
      %p240 = scmp.le.s32.totalorder 1, %s16
      %p241 = scmp.lt.s32.totalorder %s16, 3
      %p242 = pnand %p240, %p241
      %p243 = pneg %p242
      // Predicated region
      $region45: #{tpu_custom_call.1} parent=5 // pred_check
        _
      $region46: #{tpu_custom_call.1} parent=5 // pred_check_branch
        %245 = sbr.rel (%p242) target = $region48
      $region47: #{tpu_custom_call.1} parent=5 // pred_region
        %s246 = ssub.s32 %s16, 1
        %s247 = smul.u32 16, %s21
        %p248 = scmp.lt.s32.totalorder %s247, 31
        %s249 = scalar_select %p248, %s247, 31
        %s250 = smul.addr %s249, 8
        %s251 = scalar_lea.vmem %s0, %s250
        %p252 = pneg %p42
        %p253 = pneg %p39
        %p254 = pneg %p63
        %p255 = pneg %p60
        %p256 = pneg %p84
        %p257 = pneg %p81
        %p258 = pneg %p105
        %p259 = pneg %p102
        %p260 = pneg %p126
        %p261 = pneg %p123
        %p262 = pneg %p147
        %p263 = pneg %p144
        %p264 = pneg %p168
        %p265 = pneg %p165
        %p266 = pneg %p194
        %p267 = pneg %p191
        %s268 = sand.u32 %s181, 1
        %s269 = scalar_lea.sflag [#allocation3], %s268
        %s270 = sand.u32 %s181, 1
        %s271 = smul.addr %s270, 64
        %s272 = scalar_lea.vmem [#allocation2], %s271
        %s273 = smul.u32 16, %s21
        %p274 = scmp.lt.s32.totalorder %s273, 31
        %s275 = scalar_select %p274, %s273, 31
        %s276 = smul.addr %s275, 8
        %s277 = scalar_lea.vmem %s0, %s276
        %s278 = smul.u32 16, %s21
        %s279 = smul.u32 16, %s21
        %v281 = vld [vmem:[%s277] sm:$0xff]
        %v282 = vld [vmem:[%s277 + $0x8] sm:$0xff]
        %v283 = vld [vmem:[%s277 + $0x10] sm:$0xff]
        %v284 = vld [vmem:[%s277 + $0x18] sm:$0xff]
        %v285 = vld [vmem:[%s277 + $0x20] sm:$0xff]
        %v286 = vld [vmem:[%s277 + $0x28] sm:$0xff]
        %v287 = vld [vmem:[%s277 + $0x30] sm:$0xff]
        %v288 = vld [vmem:[%s277 + $0x38] sm:$0xff]
        %v289 = vld [vmem:[%s277 + $0x40] sm:$0xff]
        %v290 = vld [vmem:[%s277 + $0x48] sm:$0xff]
        %v291 = vld [vmem:[%s277 + $0x50] sm:$0xff]
        %v292 = vld [vmem:[%s277 + $0x58] sm:$0xff]
        %v293 = vld [vmem:[%s277 + $0x60] sm:$0xff]
        %v294 = vld [vmem:[%s277 + $0x68] sm:$0xff]
        %v295 = vld [vmem:[%s277 + $0x70] sm:$0xff]
        %v296 = vld [vmem:[%s277 + $0x78] sm:$0xff]
        %v297 = vpack.c.bf16 %v282, %v281
        %v298 = vpack.c.bf16 %v284, %v283
        %v299 = vpack.c.bf16 %v286, %v285
        %v300 = vpack.c.bf16 %v288, %v287
        %v301 = vpack.c.bf16 %v290, %v289
        %v302 = vpack.c.bf16 %v292, %v291
        %v303 = vpack.c.bf16 %v294, %v293
        %v304 = vpack.c.bf16 %v296, %v295
        %v305 = vld [vmem:[%s1] sm:$0xf]
        %v306 = vld [vmem:[%s1 + $0x4] sm:$0xf]
        %v307 = vld [vmem:[%s1 + $0x8] sm:$0xf]
        %v308 = vld [vmem:[%s1 + $0xc] sm:$0xf]
        %v309 = vld [vmem:[%s2] sm:$0x1]
        %v311 = vperm.slane %v309, 0
        %v317 = vunpack.c.l.b16 %v305
        %v318 = vunpack.c.l.b16 %v306
        %v319 = vunpack.c.l.b16 %v307
        %v320 = vunpack.c.l.b16 %v308
        %v321 = vpack.c.b16 %v318, %v317
        %v322 = vpack.c.b16 %v320, %v319
        %vm325 = vcmask 261120
        %v327 = vsel %vm325, %v297, 0
        %v330 = vsel %vm325, %v298, 0
        %v333 = vsel %vm325, %v299, 0
        %v336 = vsel %vm325, %v300, 0
        %v339 = vsel %vm325, %v301, 0
        %v342 = vsel %vm325, %v302, 0
        %v345 = vsel %vm325, %v303, 0
        %v348 = vsel %vm325, %v304, 0
        %350 = vmatpush.bf16.msra.mxu0 0
        %351 = vmatpush.bf16.msra.mxu0 0
        %352 = vmatpush.bf16.msra.mxu0 0
        %353 = vmatpush.bf16.msra.mxu0 0
        %354 = vmatpush.bf16.msra.mxu0 0
        %355 = vmatpush.bf16.msra.mxu0 0
        %356 = vmatpush.bf16.msra.mxu0 %v322
        %357 = vmatpush.bf16.msra.mxu0 %v321
        %358 = vmatmul.bf16.gmra.mxu0 %v327
        %v359 = vpop.f32.mrf.mxu0
        %v360 = vadd.f32 %v311, %v359
        %v361 = vpop.f32.mrf.mxu0
        %v362 = vadd.f32 %v311, %v361
        %363 = vmatmul.bf16.gmra.mxu0 %v330
        %v364 = vpop.f32.mrf.mxu0
        %v365 = vadd.f32 %v311, %v364
        %v366 = vpop.f32.mrf.mxu0
        %v367 = vadd.f32 %v311, %v366
        %368 = vmatmul.bf16.gmra.mxu0 %v333
        %v369 = vpop.f32.mrf.mxu0
        %v370 = vadd.f32 %v311, %v369
        %v371 = vpop.f32.mrf.mxu0
        %v372 = vadd.f32 %v311, %v371
        %373 = vmatmul.bf16.gmra.mxu0 %v336
        %v374 = vpop.f32.mrf.mxu0
        %v375 = vadd.f32 %v311, %v374
        %v376 = vpop.f32.mrf.mxu0
        %v377 = vadd.f32 %v311, %v376
        %378 = vmatmul.bf16.gmra.mxu0 %v339
        %v379 = vpop.f32.mrf.mxu0
        %v380 = vadd.f32 %v311, %v379
        %v381 = vpop.f32.mrf.mxu0
        %v382 = vadd.f32 %v311, %v381
        %383 = vmatmul.bf16.gmra.mxu0 %v342
        %v384 = vpop.f32.mrf.mxu0
        %v385 = vadd.f32 %v311, %v384
        %v386 = vpop.f32.mrf.mxu0
        %v387 = vadd.f32 %v311, %v386
        %388 = vmatmul.bf16.gmra.mxu0 %v345
        %v389 = vpop.f32.mrf.mxu0
        %v390 = vadd.f32 %v311, %v389
        %v391 = vpop.f32.mrf.mxu0
        %v392 = vadd.f32 %v311, %v391
        %393 = vmatmul.bf16.gmra.mxu0 %v348
        %v394 = vpop.f32.mrf.mxu0
        %v395 = vadd.f32 %v311, %v394
        %v396 = vpop.f32.mrf.mxu0
        %v397 = vadd.f32 %v311, %v396
        %398 = vdwg.mxu0
        %v399 = vmax.f32 %v360, 0.0
        %v400 = vmax.f32 %v362, 0.0
        %v401 = vmax.f32 %v365, 0.0
        %v402 = vmax.f32 %v367, 0.0
        %v403 = vmax.f32 %v370, 0.0
        %v404 = vmax.f32 %v372, 0.0
        %v405 = vmax.f32 %v375, 0.0
        %v406 = vmax.f32 %v377, 0.0
        %v407 = vmax.f32 %v380, 0.0
        %v408 = vmax.f32 %v382, 0.0
        %v409 = vmax.f32 %v385, 0.0
        %v410 = vmax.f32 %v387, 0.0
        %v411 = vmax.f32 %v390, 0.0
        %v412 = vmax.f32 %v392, 0.0
        %v413 = vmax.f32 %v395, 0.0
        %v414 = vmax.f32 %v397, 0.0
        %v415 = vpack.c.bf16 %v400, %v399
        %v416 = vpack.c.bf16 %v402, %v401
        %v417 = vpack.c.bf16 %v404, %v403
        %v418 = vpack.c.bf16 %v406, %v405
        %v419 = vpack.c.bf16 %v408, %v407
        %v420 = vpack.c.bf16 %v410, %v409
        %v421 = vpack.c.bf16 %v412, %v411
        %v422 = vpack.c.bf16 %v414, %v413
        %v423 = vld [vmem:[%s3] sm:$0xf]
        %v424 = vld [vmem:[%s3 + $0x4] sm:$0xf]
        %v425 = vld [vmem:[%s3 + $0x8] sm:$0xf]
        %v426 = vld [vmem:[%s3 + $0xc] sm:$0xf]
        %v427 = vld [vmem:[%s3 + $0x10] sm:$0xf]
        %v428 = vld [vmem:[%s3 + $0x14] sm:$0xf]
        %v429 = vld [vmem:[%s3 + $0x18] sm:$0xf]
        %v430 = vld [vmem:[%s3 + $0x1c] sm:$0xf]
        %v431 = vld [vmem:[%s4] sm:$0x1]
        %v433 = vperm.slane %v431, 0
        %v443 = vunpack.c.l.b16 %v423
        %v444 = vunpack.c.l.b16 %v424
        %v445 = vunpack.c.l.b16 %v425
        %v446 = vunpack.c.l.b16 %v426
        %v447 = vunpack.c.l.b16 %v427
        %v448 = vunpack.c.l.b16 %v428
        %v449 = vunpack.c.l.b16 %v429
        %v450 = vunpack.c.l.b16 %v430
        %v451 = vpack.c.b16 %v444, %v443
        %v452 = vpack.c.b16 %v446, %v445
        %v453 = vpack.c.b16 %v448, %v447
        %v454 = vpack.c.b16 %v450, %v449
        %vm459 = vcmask 523264
        %v461 = vsel %vm459, %v415, 0
        %v464 = vsel %vm459, %v416, 0
        %v467 = vsel %vm459, %v417, 0
        %v470 = vsel %vm459, %v418, 0
        %v473 = vsel %vm459, %v419, 0
        %v476 = vsel %vm459, %v420, 0
        %v479 = vsel %vm459, %v421, 0
        %v482 = vsel %vm459, %v422, 0
        %484 = vmatpush.bf16.msra.mxu0 0
        %485 = vmatpush.bf16.msra.mxu0 0
        %486 = vmatpush.bf16.msra.mxu0 0
        %487 = vmatpush.bf16.msra.mxu0 0
        %488 = vmatpush.bf16.msra.mxu0 %v454
        %489 = vmatpush.bf16.msra.mxu0 %v453
        %490 = vmatpush.bf16.msra.mxu0 %v452
        %491 = vmatpush.bf16.msra.mxu0 %v451
        %492 = vmatmul.bf16.gmra.mxu0 %v461
        %v493 = vpop.f32.mrf.mxu0
        %v494 = vadd.f32 %v433, %v493
        %v495 = vpop.f32.mrf.mxu0
        %v496 = vadd.f32 %v433, %v495
        %497 = vmatmul.bf16.gmra.mxu0 %v464
        %v498 = vpop.f32.mrf.mxu0
        %v499 = vadd.f32 %v433, %v498
        %v500 = vpop.f32.mrf.mxu0
        %v501 = vadd.f32 %v433, %v500
        %502 = vmatmul.bf16.gmra.mxu0 %v467
        %v503 = vpop.f32.mrf.mxu0
        %v504 = vadd.f32 %v433, %v503
        %v505 = vpop.f32.mrf.mxu0
        %v506 = vadd.f32 %v433, %v505
        %507 = vmatmul.bf16.gmra.mxu0 %v470
        %v508 = vpop.f32.mrf.mxu0
        %v509 = vadd.f32 %v433, %v508
        %v510 = vpop.f32.mrf.mxu0
        %v511 = vadd.f32 %v433, %v510
        %512 = vmatmul.bf16.gmra.mxu0 %v473
        %v513 = vpop.f32.mrf.mxu0
        %v514 = vadd.f32 %v433, %v513
        %v515 = vpop.f32.mrf.mxu0
        %v516 = vadd.f32 %v433, %v515
        %517 = vmatmul.bf16.gmra.mxu0 %v476
        %v518 = vpop.f32.mrf.mxu0
        %v519 = vadd.f32 %v433, %v518
        %v520 = vpop.f32.mrf.mxu0
        %v521 = vadd.f32 %v433, %v520
        %522 = vmatmul.bf16.gmra.mxu0 %v479
        %v523 = vpop.f32.mrf.mxu0
        %v524 = vadd.f32 %v433, %v523
        %v525 = vpop.f32.mrf.mxu0
        %v526 = vadd.f32 %v433, %v525
        %527 = vmatmul.bf16.gmra.mxu0 %v482
        %v528 = vpop.f32.mrf.mxu0
        %v529 = vadd.f32 %v433, %v528
        %v530 = vpop.f32.mrf.mxu0
        %v531 = vadd.f32 %v433, %v530
        %532 = vdwg.mxu0
        %v533 = vmax.f32 %v494, 0.0
        %v534 = vmax.f32 %v496, 0.0
        %v535 = vmax.f32 %v499, 0.0
        %v536 = vmax.f32 %v501, 0.0
        %v537 = vmax.f32 %v504, 0.0
        %v538 = vmax.f32 %v506, 0.0
        %v539 = vmax.f32 %v509, 0.0
        %v540 = vmax.f32 %v511, 0.0
        %v541 = vmax.f32 %v514, 0.0
        %v542 = vmax.f32 %v516, 0.0
        %v543 = vmax.f32 %v519, 0.0
        %v544 = vmax.f32 %v521, 0.0
        %v545 = vmax.f32 %v524, 0.0
        %v546 = vmax.f32 %v526, 0.0
        %v547 = vmax.f32 %v529, 0.0
        %v548 = vmax.f32 %v531, 0.0
        %v549 = vpack.c.bf16 %v534, %v533
        %v550 = vpack.c.bf16 %v536, %v535
        %v551 = vpack.c.bf16 %v538, %v537
        %v552 = vpack.c.bf16 %v540, %v539
        %v553 = vpack.c.bf16 %v542, %v541
        %v554 = vpack.c.bf16 %v544, %v543
        %v555 = vpack.c.bf16 %v546, %v545
        %v556 = vpack.c.bf16 %v548, %v547
        %v557 = vld [vmem:[%s5] sm:$0xf]
        %v558 = vld [vmem:[%s5 + $0x4] sm:$0xf]
        %v559 = vld [vmem:[%s5 + $0x8] sm:$0xf]
        %v560 = vld [vmem:[%s5 + $0xc] sm:$0xf]
        %v561 = vld [vmem:[%s6] sm:$0x1]
        %v563 = vperm.slane %v561, 0
        %v569 = vunpack.c.l.b16 %v557
        %v570 = vunpack.c.l.b16 %v558
        %v571 = vunpack.c.l.b16 %v559
        %v572 = vunpack.c.l.b16 %v560
        %v573 = vpack.c.b16 %v570, %v569
        %v574 = vpack.c.b16 %v572, %v571
        %v578 = vsel %vm325, %v549, 0
        %v581 = vsel %vm325, %v550, 0
        %v584 = vsel %vm325, %v551, 0
        %v587 = vsel %vm325, %v552, 0
        %v590 = vsel %vm325, %v553, 0
        %v593 = vsel %vm325, %v554, 0
        %v596 = vsel %vm325, %v555, 0
        %v599 = vsel %vm325, %v556, 0
        %601 = vmatpush.bf16.msra.mxu0 0
        %602 = vmatpush.bf16.msra.mxu0 0
        %603 = vmatpush.bf16.msra.mxu0 0
        %604 = vmatpush.bf16.msra.mxu0 0
        %605 = vmatpush.bf16.msra.mxu0 0
        %606 = vmatpush.bf16.msra.mxu0 0
        %607 = vmatpush.bf16.msra.mxu0 %v574
        %608 = vmatpush.bf16.msra.mxu0 %v573
        %609 = vmatmul.bf16.gmra.mxu0 %v578
        %v610 = vpop.f32.mrf.mxu0
        %v611 = vadd.f32 %v563, %v610
        %v612 = vpop.f32.mrf.mxu0
        %v613 = vadd.f32 %v563, %v612
        %614 = vmatmul.bf16.gmra.mxu0 %v581
        %v615 = vpop.f32.mrf.mxu0
        %v616 = vadd.f32 %v563, %v615
        %v617 = vpop.f32.mrf.mxu0
        %v618 = vadd.f32 %v563, %v617
        %619 = vmatmul.bf16.gmra.mxu0 %v584
        %v620 = vpop.f32.mrf.mxu0
        %v621 = vadd.f32 %v563, %v620
        %v622 = vpop.f32.mrf.mxu0
        %v623 = vadd.f32 %v563, %v622
        %624 = vmatmul.bf16.gmra.mxu0 %v587
        %v625 = vpop.f32.mrf.mxu0
        %v626 = vadd.f32 %v563, %v625
        %v627 = vpop.f32.mrf.mxu0
        %v628 = vadd.f32 %v563, %v627
        %629 = vmatmul.bf16.gmra.mxu0 %v590
        %v630 = vpop.f32.mrf.mxu0
        %v631 = vadd.f32 %v563, %v630
        %v632 = vpop.f32.mrf.mxu0
        %v633 = vadd.f32 %v563, %v632
        %634 = vmatmul.bf16.gmra.mxu0 %v593
        %v635 = vpop.f32.mrf.mxu0
        %v636 = vadd.f32 %v563, %v635
        %v637 = vpop.f32.mrf.mxu0
        %v638 = vadd.f32 %v563, %v637
        %639 = vmatmul.bf16.gmra.mxu0 %v596
        %v640 = vpop.f32.mrf.mxu0
        %v641 = vadd.f32 %v563, %v640
        %v642 = vpop.f32.mrf.mxu0
        %v643 = vadd.f32 %v563, %v642
        %644 = vmatmul.bf16.gmra.mxu0 %v599
        %v645 = vpop.f32.mrf.mxu0
        %v646 = vadd.f32 %v563, %v645
        %v647 = vpop.f32.mrf.mxu0
        %v648 = vadd.f32 %v563, %v647
        %649 = vdwg.mxu0
        %v650 = vtanh.pop %v611
        %v651 = vtanh.pop %v613
        %v652 = vtanh.pop %v616
        %v653 = vtanh.pop %v618
        %v654 = vtanh.pop %v621
        %v655 = vtanh.pop %v623
        %v656 = vtanh.pop %v626
        %v657 = vtanh.pop %v628
        %v658 = vtanh.pop %v631
        %v659 = vtanh.pop %v633
        %v660 = vtanh.pop %v636
        %v661 = vtanh.pop %v638
        %v662 = vtanh.pop %v641
        %v663 = vtanh.pop %v643
        %v664 = vtanh.pop %v646
        %v665 = vtanh.pop %v648
        %v666 = vpack.c.bf16 %v650, %v650
        %v667 = vpack.c.bf16 %v651, %v651
        %v668 = vpack.c.bf16 %v652, %v652
        %v669 = vpack.c.bf16 %v653, %v653
        %v670 = vpack.c.bf16 %v654, %v654
        %v671 = vpack.c.bf16 %v655, %v655
        %v672 = vpack.c.bf16 %v656, %v656
        %v673 = vpack.c.bf16 %v657, %v657
        %v674 = vpack.c.bf16 %v658, %v658
        %v675 = vpack.c.bf16 %v659, %v659
        %v676 = vpack.c.bf16 %v660, %v660
        %v677 = vpack.c.bf16 %v661, %v661
        %v678 = vpack.c.bf16 %v662, %v662
        %v679 = vpack.c.bf16 %v663, %v663
        %v680 = vpack.c.bf16 %v664, %v664
        %v681 = vpack.c.bf16 %v665, %v665
        %682 = vst [vmem:[%s272] sm:$0xf] %v666
        %683 = vst [vmem:[%s272 + $0x4] sm:$0xf] %v667
        %684 = vst [vmem:[%s272 + $0x8] sm:$0xf] %v668
        %685 = vst [vmem:[%s272 + $0xc] sm:$0xf] %v669
        %686 = vst [vmem:[%s272 + $0x10] sm:$0xf] %v670
        %687 = vst [vmem:[%s272 + $0x14] sm:$0xf] %v671
        %688 = vst [vmem:[%s272 + $0x18] sm:$0xf] %v672
        %689 = vst [vmem:[%s272 + $0x1c] sm:$0xf] %v673
        %690 = vst [vmem:[%s272 + $0x20] sm:$0xf] %v674
        %691 = vst [vmem:[%s272 + $0x24] sm:$0xf] %v675
        %692 = vst [vmem:[%s272 + $0x28] sm:$0xf] %v676
        %693 = vst [vmem:[%s272 + $0x2c] sm:$0xf] %v677
        %694 = vst [vmem:[%s272 + $0x30] sm:$0xf] %v678
        %695 = vst [vmem:[%s272 + $0x34] sm:$0xf] %v679
        %696 = vst [vmem:[%s272 + $0x38] sm:$0xf] %v680
        %697 = vst [vmem:[%s272 + $0x3c] sm:$0xf] %v681
        %s698 = sand.u32 %s181, 1
        %s699 = scalar_lea.sflag [#allocation3], %s698
        %s700 = sand.u32 %s181, 1
        %s701 = smul.addr %s700, 64
        %s702 = scalar_lea.vmem [#allocation2], %s701
        // Predicated region
        $region49: #{tpu_custom_call.1} parent=47 // pred_check
          %p703 = pneg %p191
        $region50: #{tpu_custom_call.1} parent=47 // pred_check_branch
          %705 = sbr.rel (%p703) target = $region52
        $region51: #{tpu_custom_call.1} parent=47 // pred_region
          %s706 = smul.u32 16, %s21
          %708 = vsyncadd %s699, 0
          %s709 = smul.addr %s706, 4
          %s710 = scalar_lea.hbm %s7, %s709
          %s711 = sshll.u32 %s702, 4
          %s712 = int_to_ptr.vmem [resolvable:$true] %s711
          %s713 = sshll.u32 %s710, 4
          %s714 = int_to_ptr.hbm [resolvable:$true] %s713
          %719 = dma.vmem_to_hbm [thread:$0]  %s712, 1024, %s714, %s699, 64, 64, 4
        $region52: #{tpu_custom_call.1} parent=47 // pred_fallthru
          _
      $region48: #{tpu_custom_call.1} parent=5 // pred_fallthru
        _
      %p720 = scmp.le.s32.totalorder 2, %s16
      // Predicated region
      $region53: #{tpu_custom_call.1} parent=5 // pred_check
        %p721 = pneg %p720
      $region54: #{tpu_custom_call.1} parent=5 // pred_check_branch
        %723 = sbr.rel (%p721) target = $region56
      $region55: #{tpu_custom_call.1} parent=5 // pred_region
        %s724 = ssub.s32 %s16, 2
        // Predicated region
        $region57: #{tpu_custom_call.1} parent=55 // pred_check
          %p725 = pneg %p197
        $region58: #{tpu_custom_call.1} parent=55 // pred_check_branch
          %727 = sbr.rel (%p725) target = $region60
        $region59: #{tpu_custom_call.1} parent=55 // pred_region
          %s728 = sand.u32 %s182, 1
          %s729 = scalar_lea.sflag [#allocation3], %s728
          %s730 = sand.u32 %s182, 1
          %s731 = smul.addr %s730, 64
          %s732 = scalar_lea.vmem [#allocation2], %s731
          %734 = dma.done %s729, 1024
        $region60: #{tpu_custom_call.1} parent=55 // pred_fallthru
          _
      $region56: #{tpu_custom_call.1} parent=5 // pred_fallthru
        _
    $region6: #{tpu_custom_call.1} parent=1 // loop_footer
      %s20 = sadd.s32 1, %s16
    $region7: #{tpu_custom_call.1} parent=1 // loop_footer_branch
      %15 = sbr.rel target = $region3
    $region8: #{tpu_custom_call.1} parent=1 // loop_exit
      _
    %735 = vsyncpa [#allocation3], 1
    %s736 = scalar_lea.sflag [#allocation3], 1
    %737 = vsyncpa %s736, 1

</llo_original>
